<compile_context>
chip_gen: v7x
topology: tpu7x:2x2x1
jax: 0.10.0
libtpu: 0.0.40
codegen_flags: <defaults>
</compile_context>

<pallas_src>
import functools

import jax
import jax.numpy as jnp
from jax.experimental import pallas as pl
from jax.experimental.pallas import tpu as pltpu


def _leaky(x, slope=0.01):
    return jnp.where(x > 0, x, slope * x)


def dsjda_kernel(x_ref, w1_ref, b1_ref, w2_ref, b2_ref,
                 wd_ref, bd_ref, wc_ref, bc_ref, out_ref):
    # Shared CFE: 160 -> 128 -> 64 (LeakyReLU after each Linear).
    # Matmul inputs may be bf16; accumulation, biases and LeakyReLU stay f32.
    h1 = _leaky(jnp.dot(x_ref[...], w1_ref[...],
                        preferred_element_type=jnp.float32) + b1_ref[...])
    h2 = _leaky(jnp.dot(h1.astype(w2_ref.dtype), w2_ref[...],
                        preferred_element_type=jnp.float32) + b2_ref[...])
    # All S DSFE heads fused in one MXU pass: [tile_n, 64] @ [64, S*32].
    f = _leaky(jnp.dot(h2.astype(wd_ref.dtype), wd_ref[...],
                       preferred_element_type=jnp.float32) + bd_ref[...])
    # All S classifiers fused via block-diagonal weight: [tile_n, S*32] @ [S*32, P].
    out_ref[...] = (jnp.dot(f.astype(wc_ref.dtype), wc_ref[...],
                            preferred_element_type=jnp.float32)
                    + bc_ref[...]).astype(out_ref.dtype)


def pack_params(params, number_of_source, *, compute_dtype=jnp.bfloat16):
    """One-time packing of per-source weights (hoisted out of the forward call).

    Returns (packed_arrays_tuple, P) where P is the padded classifier width.
    """
    w1, b1, w2, b2, wd, bd, wc, bc = params
    S = number_of_source
    # Lane-dense P=128 for small S; exact P=2*S for large S (e.g. module default
    # S=32 -> P=64) so the block-diagonal matmul does far less wasted work.
    P = 2 * S if 2 * S >= 64 else 128

    # Stack DSFE weights: [S, 64, 32] -> [64, S*32]; biases -> [1, S*32].
    wd_stacked = jnp.transpose(wd, (1, 0, 2)).reshape(64, S * 32)
    bd_stacked = bd.reshape(1, S * 32)

    # Block-diagonal classifier weight: [S*32, S*2] (zero off-diagonal), padded to P.
    eye = jnp.eye(S, dtype=wc.dtype)
    wc_bd = jnp.einsum('sij,st->sitj', wc, eye).reshape(S * 32, S * 2)
    wc_bd = jnp.pad(wc_bd, ((0, 0), (0, P - 2 * S)))
    bc_stacked = jnp.pad(bc.reshape(1, S * 2), ((0, 0), (0, P - 2 * S)))

    cd = compute_dtype
    packed = (w1.astype(cd), b1.reshape(1, 128).astype(jnp.float32),
              w2.astype(cd), b2.reshape(1, 64).astype(jnp.float32),
              wd_stacked.astype(cd), bd_stacked.astype(jnp.float32),
              wc_bd.astype(cd), bc_stacked.astype(jnp.float32))
    return packed, P


@functools.partial(jax.jit,
                   static_argnames=("number_of_source", "P", "tile_n", "out_dtype"))
def dsjda_forward(x, w1, b1, w2, b2, wd, bd, wc, bc, *,
                  number_of_source, P, tile_n=None, out_dtype=jnp.float32):
    """x: [N, 160].  Returns stacked predictions [N, number_of_source, 2]."""
    S = number_of_source
    N, feat = x.shape
    assert feat == 160
    cd = w1.dtype

    # Tile selection: large tiles amortize per-grid-step overhead; cap so that
    # (when N allows) the "parallel" batch grid has >= ~4 tiles for v7x's 2 TCs
    # and for double-buffering.  bf16 prefers >=16 sublanes.
    min_tile = 16 if cd == jnp.bfloat16 else 8
    if tile_n is None:
        tile_n = min(512, max(min_tile,
                              ((pl.cdiv(N, 4) + min_tile - 1) // min_tile) * min_tile))
    tile_n = max(min_tile, ((tile_n + min_tile - 1) // min_tile) * min_tile)

    grid = (pl.cdiv(N, tile_n),)
    out = pl.pallas_call(
        dsjda_kernel,
        out_shape=jax.ShapeDtypeStruct((N, P), out_dtype),
        grid_spec=pltpu.PrefetchScalarGridSpec(
            num_scalar_prefetch=0,
            grid=grid,
            in_specs=[
                pl.BlockSpec((tile_n, 160), lambda i: (i, 0)),     # x (tiled over batch)
                pl.BlockSpec((160, 128),    lambda i: (0, 0)),     # W1 (VMEM-resident)
                pl.BlockSpec((1, 128),      lambda i: (0, 0)),     # b1
                pl.BlockSpec((128, 64),     lambda i: (0, 0)),     # W2
                pl.BlockSpec((1, 64),       lambda i: (0, 0)),     # b2
                pl.BlockSpec((64, S * 32),  lambda i: (0, 0)),     # Wd stacked
                pl.BlockSpec((1, S * 32),   lambda i: (0, 0)),     # bd stacked
                pl.BlockSpec((S * 32, P),   lambda i: (0, 0)),     # Wc block-diag (padded)
                pl.BlockSpec((1, P),        lambda i: (0, 0)),     # bc stacked (padded)
            ],
            out_specs=pl.BlockSpec((tile_n, P), lambda i: (i, 0)),
        ),
        compiler_params=pltpu.CompilerParams(
            dimension_semantics=("parallel",),
            vmem_limit_bytes=32 * 1024 * 1024),
    )(x.astype(cd), w1, b1, w2, b2, wd, bd, wc, bc)

    # Single slice + reshape (fused into this jit): [N, S, 2] stacked predictions.
    return out[:, :2 * S].reshape(N, S, 2)


def init_params(key, number_of_source):
    """Deterministic init mimicking PyTorch nn.Linear default U(-1/sqrt(fan_in), ...)."""
    S = number_of_source
    ks = jax.random.split(key, 8)

    def u(k, shape, fan_in):
        bound = 1.0 / jnp.sqrt(fan_in)
        return jax.random.uniform(k, shape, jnp.float32, -bound, bound)

    w1 = u(ks[0], (160, 128), 160)
    b1 = u(ks[1], (1, 128), 160)
    w2 = u(ks[2], (128, 64), 128)
    b2 = u(ks[3], (1, 64), 128)
    wd = u(ks[4], (S, 64, 32), 64)
    bd = u(ks[5], (S, 1, 32), 64)
    wc = u(ks[6], (S, 32, 2), 32)
    bc = u(ks[7], (S, 1, 2), 32)
    return (w1, b1, w2, b2, wd, bd, wc, bc)


def reference_forward(x, params, number_of_source, compute_dtype=jnp.float32):
    """Pure-JAX reference with the same dtype handling as the kernel path."""
    w1, b1, w2, b2, wd, bd, wc, bc = params
    cd = compute_dtype

    def lin(a, w, b):
        return jnp.dot(a.astype(cd), w.astype(cd),
                       preferred_element_type=jnp.float32) + b

    h2 = _leaky(lin(_leaky(lin(x, w1, b1)), w2, b2))
    outs = []
    for i in range(number_of_source):
        f = _leaky(lin(h2, wd[i], bd[i]))
        outs.append(lin(f, wc[i], bc[i]))
    return jnp.stack(outs, axis=1)          # [N, S, 2]


if __name__ == "__main__":
    key = jax.random.PRNGKey(0)
    kx, kp, kx2 = jax.random.split(key, 3)

    # --- small demo config: S=4 sources, batch 8 -------------------------------
    N, S = 8, 4
    x = jax.random.normal(kx, (N, 160), jnp.float32)
    params = init_params(kp, S)

    # f32 path: exact against the pure-JAX reference.
    packed_f32, P_f32 = pack_params(params, S, compute_dtype=jnp.float32)
    pred_f32 = jax.block_until_ready(
        dsjda_forward(x, *packed_f32, number_of_source=S, P=P_f32))
    ref_f32 = reference_forward(x, params, S)
    assert pred_f32.shape == (N, S, 2)
    assert jnp.allclose(pred_f32, ref_f32, atol=1e-4, rtol=1e-4)

    # Default bf16-matmul path (f32 accumulation / biases / LeakyReLU).
    packed_bf, P_bf = pack_params(params, S, compute_dtype=jnp.bfloat16)
    pred_bf = jax.block_until_ready(
        dsjda_forward(x, *packed_bf, number_of_source=S, P=P_bf))
    ref_bf = reference_forward(x, params, S, compute_dtype=jnp.bfloat16)
    assert jnp.allclose(pred_bf, ref_bf, atol=2e-2, rtol=2e-2)

    # --- module-default S=32, non-multiple batch: exercises P=2*S classifier,
    # cdiv grid with clipped partial last tile, and the >=4-tile default tiling.
    N2, S2 = 300, 32
    x2 = jax.random.normal(kx2, (N2, 160), jnp.float32)
    params2 = init_params(jax.random.PRNGKey(1), S2)
    packed2, P2 = pack_params(params2, S2, compute_dtype=jnp.bfloat16)
    pred2 = jax.block_until_ready(
        dsjda_forward(x2, *packed2, number_of_source=S2, P=P2))
    ref2 = reference_forward(x2, params2, S2, compute_dtype=jnp.bfloat16)
    assert pred2.shape == (N2, S2, 2)
    assert jnp.allclose(pred2, ref2, atol=2e-2, rtol=2e-2)

    print("KERNEL_OK")
</pallas_src>

<mosaic_0001>
module attributes {stable_mosaic.version = 11 : i64} {
  func.func @dsjda_kernel(%arg0: i32, %arg1: memref<8x160xf32, #tpu.memory_space<vmem>>, %arg2: memref<160x128xf32, #tpu.memory_space<vmem>>, %arg3: memref<1x128xf32, #tpu.memory_space<vmem>>, %arg4: memref<128x64xf32, #tpu.memory_space<vmem>>, %arg5: memref<1x64xf32, #tpu.memory_space<vmem>>, %arg6: memref<64x128xf32, #tpu.memory_space<vmem>>, %arg7: memref<1x128xf32, #tpu.memory_space<vmem>>, %arg8: memref<128x128xf32, #tpu.memory_space<vmem>>, %arg9: memref<1x128xf32, #tpu.memory_space<vmem>>, %arg10: memref<8x128xf32, #tpu.memory_space<vmem>>) attributes {dimension_semantics = [#tpu.dimension_semantics<parallel>], iteration_bounds = array<i64: 1>, scalar_prefetch = 0 : i64, scratch_operands = 0 : i64, tpu.core_type = #tpu.core_type<tc>, window_params = [{transform_indices = @transform_0, window_bounds = array<i64: 8, 160>}, {pipeline_mode = #tpu.pipeline_mode<synchronous>, transform_indices = @transform_1, window_bounds = array<i64: 160, 128>}, {pipeline_mode = #tpu.pipeline_mode<synchronous>, transform_indices = @transform_2, window_bounds = array<i64: 1, 128>}, {pipeline_mode = #tpu.pipeline_mode<synchronous>, transform_indices = @transform_3, window_bounds = array<i64: 128, 64>}, {pipeline_mode = #tpu.pipeline_mode<synchronous>, transform_indices = @transform_4, window_bounds = array<i64: 1, 64>}, {pipeline_mode = #tpu.pipeline_mode<synchronous>, transform_indices = @transform_5, window_bounds = array<i64: 64, 128>}, {pipeline_mode = #tpu.pipeline_mode<synchronous>, transform_indices = @transform_6, window_bounds = array<i64: 1, 128>}, {pipeline_mode = #tpu.pipeline_mode<synchronous>, transform_indices = @transform_7, window_bounds = array<i64: 128, 128>}, {pipeline_mode = #tpu.pipeline_mode<synchronous>, transform_indices = @transform_8, window_bounds = array<i64: 1, 128>}, {transform_indices = @transform_9, window_bounds = array<i64: 8, 128>}]} {
    %c0 = arith.constant 0 : index
    %c0_0 = arith.constant 0 : index
    %0 = vector.load %arg1[%c0, %c0_0] : memref<8x160xf32, #tpu.memory_space<vmem>>, vector<8x160xf32>
    %c0_1 = arith.constant 0 : index
    %c0_2 = arith.constant 0 : index
    %1 = vector.load %arg2[%c0_1, %c0_2] : memref<160x128xf32, #tpu.memory_space<vmem>>, vector<160x128xf32>
    %cst = arith.constant dense<0.000000e+00> : vector<8x128xf32>
    %2 = tpu.matmul %0, %1, %cst {dimension_numbers = #tpu.dot_dimension_numbers<[1], [0], [0], [1], [0, 0, 1, 1], [], []>} : vector<8x160xf32>, vector<160x128xf32>, vector<8x128xf32> -> vector<8x128xf32>
    %c0_3 = arith.constant 0 : index
    %c0_4 = arith.constant 0 : index
    %3 = vector.load %arg3[%c0_3, %c0_4] : memref<1x128xf32, #tpu.memory_space<vmem>>, vector<1x128xf32>
    %4 = vector.broadcast %3 : vector<1x128xf32> to vector<8x128xf32>
    %5 = arith.addf %2, %4 : vector<8x128xf32>
    %cst_5 = arith.constant 0.000000e+00 : f32
    %6 = vector.broadcast %cst_5 : f32 to vector<8x128xf32>
    %7 = arith.cmpf ogt, %5, %6 : vector<8x128xf32>
    %cst_6 = arith.constant 0.00999999977 : f32
    %8 = vector.broadcast %cst_6 : f32 to vector<8x128xf32>
    %9 = arith.mulf %8, %5 : vector<8x128xf32>
    %10 = arith.select %7, %5, %9 : vector<8x128xi1>, vector<8x128xf32>
    %c0_7 = arith.constant 0 : index
    %c0_8 = arith.constant 0 : index
    %11 = vector.load %arg4[%c0_7, %c0_8] : memref<128x64xf32, #tpu.memory_space<vmem>>, vector<128x64xf32>
    %cst_9 = arith.constant dense<0.000000e+00> : vector<8x64xf32>
    %12 = tpu.matmul %10, %11, %cst_9 {dimension_numbers = #tpu.dot_dimension_numbers<[1], [0], [0], [1], [0, 0, 1, 1], [], []>} : vector<8x128xf32>, vector<128x64xf32>, vector<8x64xf32> -> vector<8x64xf32>
    %c0_10 = arith.constant 0 : index
    %c0_11 = arith.constant 0 : index
    %13 = vector.load %arg5[%c0_10, %c0_11] : memref<1x64xf32, #tpu.memory_space<vmem>>, vector<1x64xf32>
    %14 = vector.broadcast %13 : vector<1x64xf32> to vector<8x64xf32>
    %15 = arith.addf %12, %14 : vector<8x64xf32>
    %cst_12 = arith.constant 0.000000e+00 : f32
    %16 = vector.broadcast %cst_12 : f32 to vector<8x64xf32>
    %17 = arith.cmpf ogt, %15, %16 : vector<8x64xf32>
    %cst_13 = arith.constant 0.00999999977 : f32
    %18 = vector.broadcast %cst_13 : f32 to vector<8x64xf32>
    %19 = arith.mulf %18, %15 : vector<8x64xf32>
    %20 = arith.select %17, %15, %19 : vector<8x64xi1>, vector<8x64xf32>
    %c0_14 = arith.constant 0 : index
    %c0_15 = arith.constant 0 : index
    %21 = vector.load %arg6[%c0_14, %c0_15] : memref<64x128xf32, #tpu.memory_space<vmem>>, vector<64x128xf32>
    %cst_16 = arith.constant dense<0.000000e+00> : vector<8x128xf32>
    %22 = tpu.matmul %20, %21, %cst_16 {dimension_numbers = #tpu.dot_dimension_numbers<[1], [0], [0], [1], [0, 0, 1, 1], [], []>} : vector<8x64xf32>, vector<64x128xf32>, vector<8x128xf32> -> vector<8x128xf32>
    %c0_17 = arith.constant 0 : index
    %c0_18 = arith.constant 0 : index
    %23 = vector.load %arg7[%c0_17, %c0_18] : memref<1x128xf32, #tpu.memory_space<vmem>>, vector<1x128xf32>
    %24 = vector.broadcast %23 : vector<1x128xf32> to vector<8x128xf32>
    %25 = arith.addf %22, %24 : vector<8x128xf32>
    %cst_19 = arith.constant 0.000000e+00 : f32
    %26 = vector.broadcast %cst_19 : f32 to vector<8x128xf32>
    %27 = arith.cmpf ogt, %25, %26 : vector<8x128xf32>
    %cst_20 = arith.constant 0.00999999977 : f32
    %28 = vector.broadcast %cst_20 : f32 to vector<8x128xf32>
    %29 = arith.mulf %28, %25 : vector<8x128xf32>
    %30 = arith.select %27, %25, %29 : vector<8x128xi1>, vector<8x128xf32>
    %c0_21 = arith.constant 0 : index
    %c0_22 = arith.constant 0 : index
    %31 = vector.load %arg8[%c0_21, %c0_22] : memref<128x128xf32, #tpu.memory_space<vmem>>, vector<128x128xf32>
    %cst_23 = arith.constant dense<0.000000e+00> : vector<8x128xf32>
    %32 = tpu.matmul %30, %31, %cst_23 {dimension_numbers = #tpu.dot_dimension_numbers<[1], [0], [0], [1], [0, 0, 1, 1], [], []>} : vector<8x128xf32>, vector<128x128xf32>, vector<8x128xf32> -> vector<8x128xf32>
    %c0_24 = arith.constant 0 : index
    %c0_25 = arith.constant 0 : index
    %33 = vector.load %arg9[%c0_24, %c0_25] : memref<1x128xf32, #tpu.memory_space<vmem>>, vector<1x128xf32>
    %34 = vector.broadcast %33 : vector<1x128xf32> to vector<8x128xf32>
    %35 = arith.addf %32, %34 : vector<8x128xf32>
    %c0_26 = arith.constant 0 : index
    %c0_27 = arith.constant 0 : index
    %36 = vector.load %arg10[%c0_26, %c0_27] : memref<8x128xf32, #tpu.memory_space<vmem>>, vector<8x128xf32>
    tpu.vector_store %arg10[%c0_26, %c0_27], %35 {strides = array<i32>} : memref<8x128xf32, #tpu.memory_space<vmem>>, vector<8x128xf32>,
    return
  }
  func.func @transform_0(%arg0: i32) -> (i32, i32) {
    %c0_i32 = arith.constant 0 : i32
    %c0_i32_0 = arith.constant 0 : i32
    return %arg0, %c0_i32 : i32, i32
  }
  func.func @transform_1(%arg0: i32) -> (i32, i32) {
    %c0_i32 = arith.constant 0 : i32
    %c0_i32_0 = arith.constant 0 : i32
    %c0_i32_1 = arith.constant 0 : i32
    return %c0_i32, %c0_i32_0 : i32, i32
  }
  func.func @transform_2(%arg0: i32) -> (i32, i32) {
    %c0_i32 = arith.constant 0 : i32
    %c0_i32_0 = arith.constant 0 : i32
    %c0_i32_1 = arith.constant 0 : i32
    return %c0_i32, %c0_i32_0 : i32, i32
  }
  func.func @transform_3(%arg0: i32) -> (i32, i32) {
    %c0_i32 = arith.constant 0 : i32
    %c0_i32_0 = arith.constant 0 : i32
    %c0_i32_1 = arith.constant 0 : i32
    return %c0_i32, %c0_i32_0 : i32, i32
  }
  func.func @transform_4(%arg0: i32) -> (i32, i32) {
    %c0_i32 = arith.constant 0 : i32
    %c0_i32_0 = arith.constant 0 : i32
    %c0_i32_1 = arith.constant 0 : i32
    return %c0_i32, %c0_i32_0 : i32, i32
  }
  func.func @transform_5(%arg0: i32) -> (i32, i32) {
    %c0_i32 = arith.constant 0 : i32
    %c0_i32_0 = arith.constant 0 : i32
    %c0_i32_1 = arith.constant 0 : i32
    return %c0_i32, %c0_i32_0 : i32, i32
  }
  func.func @transform_6(%arg0: i32) -> (i32, i32) {
    %c0_i32 = arith.constant 0 : i32
    %c0_i32_0 = arith.constant 0 : i32
    %c0_i32_1 = arith.constant 0 : i32
    return %c0_i32, %c0_i32_0 : i32, i32
  }
  func.func @transform_7(%arg0: i32) -> (i32, i32) {
    %c0_i32 = arith.constant 0 : i32
    %c0_i32_0 = arith.constant 0 : i32
    %c0_i32_1 = arith.constant 0 : i32
    return %c0_i32, %c0_i32_0 : i32, i32
  }
  func.func @transform_8(%arg0: i32) -> (i32, i32) {
    %c0_i32 = arith.constant 0 : i32
    %c0_i32_0 = arith.constant 0 : i32
    %c0_i32_1 = arith.constant 0 : i32
    return %c0_i32, %c0_i32_0 : i32, i32
  }
  func.func @transform_9(%arg0: i32) -> (i32, i32) {
    %c0_i32 = arith.constant 0 : i32
    %c0_i32_0 = arith.constant 0 : i32
    return %arg0, %c0_i32 : i32, i32
  }
}

</mosaic_0001>

<llo_original>
// kernel: dsjda_forward.1
$region0: #{dsjda_forward.1}
  #allocation0 [shape = 'u32[]', space=smem, size = 0x4, offset = 0x4, fixed_abs, tag = 'smem constant byte address 0x4 - core index']
  #allocation1 [shape = 'u32[144,128]{1,0:T(1,128)}', space=vmem, size = 0x12000, scoped, tag = 'internal scratch']
  %s0 = inlined_call_operand.vmem [shape: f32[8,160], index: 0, kind: input, shape index: {}]
  %s1 = inlined_call_operand.vmem [shape: f32[160,128], index: 1, kind: input, shape index: {}]
  %s2 = inlined_call_operand.vmem [shape: f32[1,128], index: 2, kind: input, shape index: {}]
  %s3 = inlined_call_operand.vmem [shape: f32[128,64], index: 3, kind: input, shape index: {}]
  %s4 = inlined_call_operand.vmem [shape: f32[1,64], index: 4, kind: input, shape index: {}]
  %s5 = inlined_call_operand.hbm [shape: f32[64,128], index: 5, kind: input, shape index: {}]
  %s6 = inlined_call_operand.vmem [shape: f32[1,128], index: 6, kind: input, shape index: {}]
  %s7 = inlined_call_operand.hbm [shape: f32[128,128], index: 7, kind: input, shape index: {}]
  %s8 = inlined_call_operand.vmem [shape: f32[1,128], index: 8, kind: input, shape index: {}]
  %s9 = inlined_call_operand.vmem [shape: f32[8,128], index: 9, kind: output, shape index: {}]
  %s10 = sld [smem:[#allocation0]]
  $region54: #{dsjda_forward.1} parent=0
    _
  %s12 = ssub.s32 1, %s10
  %s13 = scalar_select 0, %s12, %s10
  $region1: #{dsjda_forward.1} parent=0
    #allocation2 [shape = 'u8[32768]{0}', space=vmem, size = 0x8000, scoped, tag = 'input window, operand 5, single buffered']
    #allocation3 [shape = 's32[1]{0}', space=sflag, size = 0x4, scoped, tag = 'scoped memory for dsjda_forward.1']
    #allocation4 [shape = 'u8[65536]{0}', space=vmem, size = 0x10000, scoped, tag = 'input window, operand 7, single buffered']
    #allocation5 [shape = 's32[1]{0}', space=sflag, size = 0x4, scoped, tag = 'scoped memory for dsjda_forward.1']
    %14 = vsyncpa [#allocation3], 0
    %15 = vsyncpa [#allocation5], 0
    // Predicated region
    $region2: #{dsjda_forward.1} parent=1 // pred_check
      _
    $region3: #{dsjda_forward.1} parent=1 // pred_check_branch
      %17 = sbr.rel (0) target = $region5
    $region4: #{dsjda_forward.1} parent=1 // pred_region
      _
    $region5: #{dsjda_forward.1} parent=1 // pred_fallthru
      _
    // Predicated region
    $region6: #{dsjda_forward.1} parent=1 // pred_check
      _
    $region7: #{dsjda_forward.1} parent=1 // pred_check_branch
      %19 = sbr.rel (0) target = $region9
    $region8: #{dsjda_forward.1} parent=1 // pred_region
      _
    $region9: #{dsjda_forward.1} parent=1 // pred_fallthru
      _
    // Predicated region
    $region10: #{dsjda_forward.1} parent=1 // pred_check
      _
    $region11: #{dsjda_forward.1} parent=1 // pred_check_branch
      %21 = sbr.rel (0) target = $region13
    $region12: #{dsjda_forward.1} parent=1 // pred_region
      _
    $region13: #{dsjda_forward.1} parent=1 // pred_fallthru
      _
    // Predicated region
    $region14: #{dsjda_forward.1} parent=1 // pred_check
      _
    $region15: #{dsjda_forward.1} parent=1 // pred_check_branch
      %23 = sbr.rel (0) target = $region17
    $region16: #{dsjda_forward.1} parent=1 // pred_region
      _
    $region17: #{dsjda_forward.1} parent=1 // pred_fallthru
      _
    // Predicated region
    $region18: #{dsjda_forward.1} parent=1 // pred_check
      _
    $region19: #{dsjda_forward.1} parent=1 // pred_check_branch
      %25 = sbr.rel (0) target = $region21
    $region20: #{dsjda_forward.1} parent=1 // pred_region
      _
    $region21: #{dsjda_forward.1} parent=1 // pred_fallthru
      _
    // Predicated region
    $region22: #{dsjda_forward.1} parent=1 // pred_check
      _
    $region23: #{dsjda_forward.1} parent=1 // pred_check_branch
      %27 = sbr.rel (0) target = $region25
    $region24: #{dsjda_forward.1} parent=1 // pred_region
      %s29 = ssub.s32 1024, 1024
      %30 = vsyncadd [#allocation3], %s29
      %s31 = sshll.u32 [#allocation2], 4
      %s32 = int_to_ptr.vmem [resolvable:$true] %s31
      %37 = dma.hbm_to_vmem [thread:$0]  %s5, 1024, %s32, [#allocation3], 128, 128, 8
    $region25: #{dsjda_forward.1} parent=1 // pred_fallthru
      _
    // Predicated region
    $region26: #{dsjda_forward.1} parent=1 // pred_check
      _
    $region27: #{dsjda_forward.1} parent=1 // pred_check_branch
      %39 = sbr.rel (0) target = $region29
    $region28: #{dsjda_forward.1} parent=1 // pred_region
      _
    $region29: #{dsjda_forward.1} parent=1 // pred_fallthru
      _
    // Predicated region
    $region30: #{dsjda_forward.1} parent=1 // pred_check
      _
    $region31: #{dsjda_forward.1} parent=1 // pred_check_branch
      %41 = sbr.rel (0) target = $region33
    $region32: #{dsjda_forward.1} parent=1 // pred_region
      %s43 = ssub.s32 2048, 2048
      %44 = vsyncadd [#allocation5], %s43
      %s45 = sshll.u32 [#allocation4], 4
      %s46 = int_to_ptr.vmem [resolvable:$true] %s45
      %51 = dma.hbm_to_vmem [thread:$0]  %s7, 2048, %s46, [#allocation5], 128, 128, 8
    $region33: #{dsjda_forward.1} parent=1 // pred_fallthru
      _
    // Predicated region
    $region34: #{dsjda_forward.1} parent=1 // pred_check
      _
    $region35: #{dsjda_forward.1} parent=1 // pred_check_branch
      %53 = sbr.rel (0) target = $region37
    $region36: #{dsjda_forward.1} parent=1 // pred_region
      _
    $region37: #{dsjda_forward.1} parent=1 // pred_fallthru
      _
    // Predicated region
    $region38: #{dsjda_forward.1} parent=1 // pred_check
      _
    $region39: #{dsjda_forward.1} parent=1 // pred_check_branch
      %55 = sbr.rel (0) target = $region41
    $region40: #{dsjda_forward.1} parent=1 // pred_region
      %56 = dma.done [#allocation3], 1024
    $region41: #{dsjda_forward.1} parent=1 // pred_fallthru
      _
    // Predicated region
    $region42: #{dsjda_forward.1} parent=1 // pred_check
      _
    $region43: #{dsjda_forward.1} parent=1 // pred_check_branch
      %58 = sbr.rel (0) target = $region45
    $region44: #{dsjda_forward.1} parent=1 // pred_region
      %59 = dma.done [#allocation5], 2048
    $region45: #{dsjda_forward.1} parent=1 // pred_fallthru
      _
    %v60 = vld [vmem:[%s0] sm:$0xff]
    %v61 = vld [vmem:[%s0 + $0x8] sm:$0xff]
    %v62 = vld [vmem:[%s1] sm:$0xff]
    %v63 = vld [vmem:[%s1 + $0x8] sm:$0xff]
    %v64 = vld [vmem:[%s1 + $0x10] sm:$0xff]
    %v65 = vld [vmem:[%s1 + $0x18] sm:$0xff]
    %v66 = vld [vmem:[%s1 + $0x20] sm:$0xff]
    %v67 = vld [vmem:[%s1 + $0x28] sm:$0xff]
    %v68 = vld [vmem:[%s1 + $0x30] sm:$0xff]
    %v69 = vld [vmem:[%s1 + $0x38] sm:$0xff]
    %v70 = vld [vmem:[%s1 + $0x40] sm:$0xff]
    %v71 = vld [vmem:[%s1 + $0x48] sm:$0xff]
    %v72 = vld [vmem:[%s1 + $0x50] sm:$0xff]
    %v73 = vld [vmem:[%s1 + $0x58] sm:$0xff]
    %v74 = vld [vmem:[%s1 + $0x60] sm:$0xff]
    %v75 = vld [vmem:[%s1 + $0x68] sm:$0xff]
    %v76 = vld [vmem:[%s1 + $0x70] sm:$0xff]
    %v77 = vld [vmem:[%s1 + $0x78] sm:$0xff]
    %v78 = vld [vmem:[%s1 + $0x80] sm:$0xff]
    %v79 = vld [vmem:[%s1 + $0x88] sm:$0xff]
    %v80 = vld [vmem:[%s1 + $0x90] sm:$0xff]
    %v81 = vld [vmem:[%s1 + $0x98] sm:$0xff]
    %v82 = vld [vmem:[%s2] sm:$0x1]
    %v84 = vlaneseq
    %v85 = vshrl.u32 %v84, 7
    %v86 = vsub.s32 0, %v85
    %v87 = vrot.slane %v82, %v86
    %vm89 = vcmask 261120
    %v91 = vsel %vm89, %v61, 0
    %93 = vmatprep.subr.mxu0 0.0
    %94 = vmatpush1.msra.mxu0 %v62
    %95 = vmatprep.subr.mxu0 0.0
    %96 = vmatpush1.msra.mxu0 %v63
    %97 = vmatprep.subr.mxu0 0.0
    %98 = vmatpush1.msra.mxu0 %v64
    %99 = vmatprep.subr.mxu0 0.0
    %100 = vmatpush1.msra.mxu0 %v65
    %101 = vmatprep.subr.mxu0 0.0
    %102 = vmatpush1.msra.mxu0 %v66
    %103 = vmatprep.subr.mxu0 0.0
    %104 = vmatpush1.msra.mxu0 %v67
    %105 = vmatprep.subr.mxu0 0.0
    %106 = vmatpush1.msra.mxu0 %v68
    %107 = vmatprep.subr.mxu0 0.0
    %108 = vmatpush1.msra.mxu0 %v69
    %109 = vmatprep.subr.mxu0 0.0
    %110 = vmatpush1.msra.mxu0 %v70
    %111 = vmatprep.subr.mxu0 0.0
    %112 = vmatpush1.msra.mxu0 %v71
    %113 = vmatprep.subr.mxu0 0.0
    %114 = vmatpush1.msra.mxu0 %v72
    %115 = vmatprep.subr.mxu0 0.0
    %116 = vmatpush1.msra.mxu0 %v73
    %117 = vmatprep.subr.mxu0 0.0
    %118 = vmatpush1.msra.mxu0 %v74
    %119 = vmatprep.subr.mxu0 0.0
    %120 = vmatpush1.msra.mxu0 %v75
    %121 = vmatprep.subr.mxu0 0.0
    %122 = vmatpush1.msra.mxu0 %v76
    %123 = vmatprep.subr.mxu0 0.0
    %124 = vmatpush1.msra.mxu0 %v77
    %125 = vmatprep.subr.mxu0 0.0
    %126 = vmatpush1.msra.mxu0 %v78
    %127 = vmatprep.subr.mxu0 0.0
    %128 = vmatpush1.msra.mxu0 %v79
    %129 = vmatprep.subr.mxu0 0.0
    %130 = vmatpush1.msra.mxu0 %v80
    %131 = vmatprep.subr.mxu0 0.0
    %132 = vmatpush1.msra.mxu0 %v81
    %133 = vmatprep.subr.mxu0 0.0
    %134 = vmatpush1.msra.mxu0 0.0
    %135 = vmatprep.subr.mxu0 0.0
    %136 = vmatpush1.msra.mxu0 0.0
    %137 = vmatprep.subr.mxu0 0.0
    %138 = vmatpush1.msra.mxu0 0.0
    %139 = vmatprep.subr.mxu0 0.0
    %140 = vmatpush1.msra.mxu0 0.0
    %141 = vmatprep.subr.mxu0 0.0
    %142 = vmatpush1.msra.mxu0 0.0
    %143 = vmatprep.subr.mxu0 0.0
    %144 = vmatpush1.msra.mxu0 0.0
    %145 = vmatprep.subr.mxu0 0.0
    %146 = vmatpush1.msra.mxu0 0.0
    %147 = vmatprep.subr.mxu0 0.0
    %148 = vmatpush1.msra.mxu0 0.0
    %149 = vmatprep.subr.mxu0 0.0
    %150 = vmatpush1.msra.mxu0 0.0
    %151 = vmatprep.subr.mxu0 0.0
    %152 = vmatpush1.msra.mxu0 0.0
    %153 = vmatprep.subr.mxu0 0.0
    %154 = vmatpush1.msra.mxu0 0.0
    %155 = vmatprep.subr.mxu0 0.0
    %156 = vmatpush1.msra.mxu0 0.0
    %157 = vmatprep.mubr.f32.mxu0 %v91
    %158 = vmatmul.mubr.f32.gmra.mrb[0].mxu0 %v60
    %v159 = vpop.f32.mrb[0].mxu0
    %v160 = vadd.f32 %v87, %v159
    %v161 = vpop.f32.mrb[0].mxu0
    %162 = vdwg.mxu0
    %vm163 = vcmp.gt.f32.partialorder %v160, 0.0
    %v164 = vmul.f32 %v160, 0.01
    %v165 = vsel %vm163, %v160, %v164
    %v166 = vld [vmem:[%s3] sm:$0xff]
    %v167 = vld [vmem:[%s3 + $0x8] sm:$0xff]
    %v168 = vld [vmem:[%s3 + $0x10] sm:$0xff]
    %v169 = vld [vmem:[%s3 + $0x18] sm:$0xff]
    %v170 = vld [vmem:[%s3 + $0x20] sm:$0xff]
    %v171 = vld [vmem:[%s3 + $0x28] sm:$0xff]
    %v172 = vld [vmem:[%s3 + $0x30] sm:$0xff]
    %v173 = vld [vmem:[%s3 + $0x38] sm:$0xff]
    %v174 = vld [vmem:[%s3 + $0x40] sm:$0xff]
    %v175 = vld [vmem:[%s3 + $0x48] sm:$0xff]
    %v176 = vld [vmem:[%s3 + $0x50] sm:$0xff]
    %v177 = vld [vmem:[%s3 + $0x58] sm:$0xff]
    %v178 = vld [vmem:[%s3 + $0x60] sm:$0xff]
    %v179 = vld [vmem:[%s3 + $0x68] sm:$0xff]
    %v180 = vld [vmem:[%s3 + $0x70] sm:$0xff]
    %v181 = vld [vmem:[%s3 + $0x78] sm:$0xff]
    %v182 = vld [vmem:[%s4] sm:$0x1]
    %v184 = vlaneseq
    %v185 = vshrl.u32 %v184, 7
    %v186 = vsub.s32 0, %v185
    %v187 = vrot.slane %v182, %v186
    %189 = vmatprep.subr.mxu0 0.0
    %190 = vmatpush1.msra.mxu0 %v166
    %191 = vmatprep.subr.mxu0 0.0
    %192 = vmatpush1.msra.mxu0 %v167
    %193 = vmatprep.subr.mxu0 0.0
    %194 = vmatpush1.msra.mxu0 %v168
    %195 = vmatprep.subr.mxu0 0.0
    %196 = vmatpush1.msra.mxu0 %v169
    %197 = vmatprep.subr.mxu0 0.0
    %198 = vmatpush1.msra.mxu0 %v170
    %199 = vmatprep.subr.mxu0 0.0
    %200 = vmatpush1.msra.mxu0 %v171
    %201 = vmatprep.subr.mxu0 0.0
    %202 = vmatpush1.msra.mxu0 %v172
    %203 = vmatprep.subr.mxu0 0.0
    %204 = vmatpush1.msra.mxu0 %v173
    %205 = vmatprep.subr.mxu0 0.0
    %206 = vmatpush1.msra.mxu0 %v174
    %207 = vmatprep.subr.mxu0 0.0
    %208 = vmatpush1.msra.mxu0 %v175
    %209 = vmatprep.subr.mxu0 0.0
    %210 = vmatpush1.msra.mxu0 %v176
    %211 = vmatprep.subr.mxu0 0.0
    %212 = vmatpush1.msra.mxu0 %v177
    %213 = vmatprep.subr.mxu0 0.0
    %214 = vmatpush1.msra.mxu0 %v178
    %215 = vmatprep.subr.mxu0 0.0
    %216 = vmatpush1.msra.mxu0 %v179
    %217 = vmatprep.subr.mxu0 0.0
    %218 = vmatpush1.msra.mxu0 %v180
    %219 = vmatprep.subr.mxu0 0.0
    %220 = vmatpush1.msra.mxu0 %v181
    %221 = vmatprep.subr.mxu0 0.0
    %222 = vmatpush1.msra.mxu0 0.0
    %223 = vmatprep.subr.mxu0 0.0
    %224 = vmatpush1.msra.mxu0 0.0
    %225 = vmatprep.subr.mxu0 0.0
    %226 = vmatpush1.msra.mxu0 0.0
    %227 = vmatprep.subr.mxu0 0.0
    %228 = vmatpush1.msra.mxu0 0.0
    %229 = vmatprep.subr.mxu0 0.0
    %230 = vmatpush1.msra.mxu0 0.0
    %231 = vmatprep.subr.mxu0 0.0
    %232 = vmatpush1.msra.mxu0 0.0
    %233 = vmatprep.subr.mxu0 0.0
    %234 = vmatpush1.msra.mxu0 0.0
    %235 = vmatprep.subr.mxu0 0.0
    %236 = vmatpush1.msra.mxu0 0.0
    %237 = vmatprep.subr.mxu0 0.0
    %238 = vmatpush1.msra.mxu0 0.0
    %239 = vmatprep.subr.mxu0 0.0
    %240 = vmatpush1.msra.mxu0 0.0
    %241 = vmatprep.subr.mxu0 0.0
    %242 = vmatpush1.msra.mxu0 0.0
    %243 = vmatprep.subr.mxu0 0.0
    %244 = vmatpush1.msra.mxu0 0.0
    %245 = vmatprep.subr.mxu0 0.0
    %246 = vmatpush1.msra.mxu0 0.0
    %247 = vmatprep.subr.mxu0 0.0
    %248 = vmatpush1.msra.mxu0 0.0
    %249 = vmatprep.subr.mxu0 0.0
    %250 = vmatpush1.msra.mxu0 0.0
    %251 = vmatprep.subr.mxu0 0.0
    %252 = vmatpush1.msra.mxu0 0.0
    %253 = vmatprep.mubr.f32.mxu0 0.0
    %254 = vmatmul.mubr.f32.gmra.mrb[0].mxu0 %v165
    %v255 = vpop.f32.mrb[0].mxu0
    %v256 = vadd.f32 %v187, %v255
    %v257 = vpop.f32.mrb[0].mxu0
    %258 = vdwg.mxu0
    %vm259 = vcmp.gt.f32.partialorder %v256, 0.0
    %v260 = vmul.f32 %v256, 0.01
    %v261 = vsel %vm259, %v256, %v260
    %v262 = vld [vmem:[#allocation2] sm:$0xff]
    %v263 = vld [vmem:[#allocation2 + $0x8] sm:$0xff]
    %v264 = vld [vmem:[#allocation2 + $0x10] sm:$0xff]
    %v265 = vld [vmem:[#allocation2 + $0x18] sm:$0xff]
    %v266 = vld [vmem:[#allocation2 + $0x20] sm:$0xff]
    %v267 = vld [vmem:[#allocation2 + $0x28] sm:$0xff]
    %v268 = vld [vmem:[#allocation2 + $0x30] sm:$0xff]
    %v269 = vld [vmem:[#allocation2 + $0x38] sm:$0xff]
    %v270 = vld [vmem:[%s6] sm:$0x1]
    %v272 = vlaneseq
    %v273 = vshrl.u32 %v272, 7
    %v274 = vsub.s32 0, %v273
    %v275 = vrot.slane %v270, %v274
    %vm277 = vcmask 523264
    %v279 = vsel %vm277, %v261, 0
    %281 = vmatprep.subr.mxu0 0.0
    %282 = vmatpush1.msra.mxu0 %v262
    %283 = vmatprep.subr.mxu0 0.0
    %284 = vmatpush1.msra.mxu0 %v263
    %285 = vmatprep.subr.mxu0 0.0
    %286 = vmatpush1.msra.mxu0 %v264
    %287 = vmatprep.subr.mxu0 0.0
    %288 = vmatpush1.msra.mxu0 %v265
    %289 = vmatprep.subr.mxu0 0.0
    %290 = vmatpush1.msra.mxu0 %v266
    %291 = vmatprep.subr.mxu0 0.0
    %292 = vmatpush1.msra.mxu0 %v267
    %293 = vmatprep.subr.mxu0 0.0
    %294 = vmatpush1.msra.mxu0 %v268
    %295 = vmatprep.subr.mxu0 0.0
    %296 = vmatpush1.msra.mxu0 %v269
    %297 = vmatprep.subr.mxu0 0.0
    %298 = vmatpush1.msra.mxu0 0.0
    %299 = vmatprep.subr.mxu0 0.0
    %300 = vmatpush1.msra.mxu0 0.0
    %301 = vmatprep.subr.mxu0 0.0
    %302 = vmatpush1.msra.mxu0 0.0
    %303 = vmatprep.subr.mxu0 0.0
    %304 = vmatpush1.msra.mxu0 0.0
    %305 = vmatprep.subr.mxu0 0.0
    %306 = vmatpush1.msra.mxu0 0.0
    %307 = vmatprep.subr.mxu0 0.0
    %308 = vmatpush1.msra.mxu0 0.0
    %309 = vmatprep.subr.mxu0 0.0
    %310 = vmatpush1.msra.mxu0 0.0
    %311 = vmatprep.subr.mxu0 0.0
    %312 = vmatpush1.msra.mxu0 0.0
    %313 = vmatprep.subr.mxu0 0.0
    %314 = vmatpush1.msra.mxu0 0.0
    %315 = vmatprep.subr.mxu0 0.0
    %316 = vmatpush1.msra.mxu0 0.0
    %317 = vmatprep.subr.mxu0 0.0
    %318 = vmatpush1.msra.mxu0 0.0
    %319 = vmatprep.subr.mxu0 0.0
    %320 = vmatpush1.msra.mxu0 0.0
    %321 = vmatprep.subr.mxu0 0.0
    %322 = vmatpush1.msra.mxu0 0.0
    %323 = vmatprep.subr.mxu0 0.0
    %324 = vmatpush1.msra.mxu0 0.0
    %325 = vmatprep.subr.mxu0 0.0
    %326 = vmatpush1.msra.mxu0 0.0
    %327 = vmatprep.subr.mxu0 0.0
    %328 = vmatpush1.msra.mxu0 0.0
    %329 = vmatprep.subr.mxu0 0.0
    %330 = vmatpush1.msra.mxu0 0.0
    %331 = vmatprep.subr.mxu0 0.0
    %332 = vmatpush1.msra.mxu0 0.0
    %333 = vmatprep.subr.mxu0 0.0
    %334 = vmatpush1.msra.mxu0 0.0
    %335 = vmatprep.subr.mxu0 0.0
    %336 = vmatpush1.msra.mxu0 0.0
    %337 = vmatprep.subr.mxu0 0.0
    %338 = vmatpush1.msra.mxu0 0.0
    %339 = vmatprep.subr.mxu0 0.0
    %340 = vmatpush1.msra.mxu0 0.0
    %341 = vmatprep.subr.mxu0 0.0
    %342 = vmatpush1.msra.mxu0 0.0
    %343 = vmatprep.subr.mxu0 0.0
    %344 = vmatpush1.msra.mxu0 0.0
    %345 = vmatprep.mubr.f32.mxu0 0.0
    %346 = vmatmul.mubr.f32.gmra.mrb[0].mxu0 %v279
    %v347 = vpop.f32.mrb[0].mxu0
    %v348 = vadd.f32 %v275, %v347
    %v349 = vpop.f32.mrb[0].mxu0
    %350 = vdwg.mxu0
    %vm351 = vcmp.gt.f32.partialorder %v348, 0.0
    %v352 = vmul.f32 %v348, 0.01
    %v353 = vsel %vm351, %v348, %v352
    %v354 = vld [vmem:[#allocation4] sm:$0xff]
    %v355 = vld [vmem:[#allocation4 + $0x8] sm:$0xff]
    %v356 = vld [vmem:[#allocation4 + $0x10] sm:$0xff]
    %v357 = vld [vmem:[#allocation4 + $0x18] sm:$0xff]
    %v358 = vld [vmem:[#allocation4 + $0x20] sm:$0xff]
    %v359 = vld [vmem:[#allocation4 + $0x28] sm:$0xff]
    %v360 = vld [vmem:[#allocation4 + $0x30] sm:$0xff]
    %v361 = vld [vmem:[#allocation4 + $0x38] sm:$0xff]
    %v362 = vld [vmem:[#allocation4 + $0x40] sm:$0xff]
    %v363 = vld [vmem:[#allocation4 + $0x48] sm:$0xff]
    %v364 = vld [vmem:[#allocation4 + $0x50] sm:$0xff]
    %v365 = vld [vmem:[#allocation4 + $0x58] sm:$0xff]
    %v366 = vld [vmem:[#allocation4 + $0x60] sm:$0xff]
    %v367 = vld [vmem:[#allocation4 + $0x68] sm:$0xff]
    %v368 = vld [vmem:[#allocation4 + $0x70] sm:$0xff]
    %v369 = vld [vmem:[#allocation4 + $0x78] sm:$0xff]
    %v370 = vld [vmem:[%s8] sm:$0x1]
    %v372 = vlaneseq
    %v373 = vshrl.u32 %v372, 7
    %v374 = vsub.s32 0, %v373
    %v375 = vrot.slane %v370, %v374
    %377 = vmatprep.subr.mxu0 0.0
    %378 = vmatpush1.msra.mxu0 %v354
    %379 = vmatprep.subr.mxu0 0.0
    %380 = vmatpush1.msra.mxu0 %v355
    %381 = vmatprep.subr.mxu0 0.0
    %382 = vmatpush1.msra.mxu0 %v356
    %383 = vmatprep.subr.mxu0 0.0
    %384 = vmatpush1.msra.mxu0 %v357
    %385 = vmatprep.subr.mxu0 0.0
    %386 = vmatpush1.msra.mxu0 %v358
    %387 = vmatprep.subr.mxu0 0.0
    %388 = vmatpush1.msra.mxu0 %v359
    %389 = vmatprep.subr.mxu0 0.0
    %390 = vmatpush1.msra.mxu0 %v360
    %391 = vmatprep.subr.mxu0 0.0
    %392 = vmatpush1.msra.mxu0 %v361
    %393 = vmatprep.subr.mxu0 0.0
    %394 = vmatpush1.msra.mxu0 %v362
    %395 = vmatprep.subr.mxu0 0.0
    %396 = vmatpush1.msra.mxu0 %v363
    %397 = vmatprep.subr.mxu0 0.0
    %398 = vmatpush1.msra.mxu0 %v364
    %399 = vmatprep.subr.mxu0 0.0
    %400 = vmatpush1.msra.mxu0 %v365
    %401 = vmatprep.subr.mxu0 0.0
    %402 = vmatpush1.msra.mxu0 %v366
    %403 = vmatprep.subr.mxu0 0.0
    %404 = vmatpush1.msra.mxu0 %v367
    %405 = vmatprep.subr.mxu0 0.0
    %406 = vmatpush1.msra.mxu0 %v368
    %407 = vmatprep.subr.mxu0 0.0
    %408 = vmatpush1.msra.mxu0 %v369
    %409 = vmatprep.subr.mxu0 0.0
    %410 = vmatpush1.msra.mxu0 0.0
    %411 = vmatprep.subr.mxu0 0.0
    %412 = vmatpush1.msra.mxu0 0.0
    %413 = vmatprep.subr.mxu0 0.0
    %414 = vmatpush1.msra.mxu0 0.0
    %415 = vmatprep.subr.mxu0 0.0
    %416 = vmatpush1.msra.mxu0 0.0
    %417 = vmatprep.subr.mxu0 0.0
    %418 = vmatpush1.msra.mxu0 0.0
    %419 = vmatprep.subr.mxu0 0.0
    %420 = vmatpush1.msra.mxu0 0.0
    %421 = vmatprep.subr.mxu0 0.0
    %422 = vmatpush1.msra.mxu0 0.0
    %423 = vmatprep.subr.mxu0 0.0
    %424 = vmatpush1.msra.mxu0 0.0
    %425 = vmatprep.subr.mxu0 0.0
    %426 = vmatpush1.msra.mxu0 0.0
    %427 = vmatprep.subr.mxu0 0.0
    %428 = vmatpush1.msra.mxu0 0.0
    %429 = vmatprep.subr.mxu0 0.0
    %430 = vmatpush1.msra.mxu0 0.0
    %431 = vmatprep.subr.mxu0 0.0
    %432 = vmatpush1.msra.mxu0 0.0
    %433 = vmatprep.subr.mxu0 0.0
    %434 = vmatpush1.msra.mxu0 0.0
    %435 = vmatprep.subr.mxu0 0.0
    %436 = vmatpush1.msra.mxu0 0.0
    %437 = vmatprep.subr.mxu0 0.0
    %438 = vmatpush1.msra.mxu0 0.0
    %439 = vmatprep.subr.mxu0 0.0
    %440 = vmatpush1.msra.mxu0 0.0
    %441 = vmatprep.mubr.f32.mxu0 0.0
    %442 = vmatmul.mubr.f32.gmra.mrb[0].mxu0 %v353
    %v443 = vpop.f32.mrb[0].mxu0
    %v444 = vadd.f32 %v375, %v443
    %v445 = vpop.f32.mrb[0].mxu0
    %446 = vdwg.mxu0
    %447 = vst [vmem:[%s9] sm:$0xff] %v444
    // Predicated region
    $region46: #{dsjda_forward.1} parent=1 // pred_check
      _
    $region47: #{dsjda_forward.1} parent=1 // pred_check_branch
      %449 = sbr.rel (0) target = $region49
    $region48: #{dsjda_forward.1} parent=1 // pred_region
      _
    $region49: #{dsjda_forward.1} parent=1 // pred_fallthru
      _
    // Predicated region
    $region50: #{dsjda_forward.1} parent=1 // pred_check
      _
    $region51: #{dsjda_forward.1} parent=1 // pred_check_branch
      %451 = sbr.rel (0) target = $region53
    $region52: #{dsjda_forward.1} parent=1 // pred_region
      _
    $region53: #{dsjda_forward.1} parent=1 // pred_fallthru
      _
    %452 = vsyncpa [#allocation3], 1
    %453 = vsyncpa [#allocation5], 1

</llo_original>
